<compile_context>
chip_gen: v6e
topology: v6e:2x2x1
jax: 0.10.0
libtpu: 0.0.40
codegen_flags: <defaults>
</compile_context>

<pallas_src>
import math
from itertools import combinations

import jax
import jax.numpy as jnp
import numpy as np
from jax.experimental import pallas as pl
from jax.experimental.pallas import tpu as pltpu


# ---------------------------------------------------------------------------
# Deterministic construction of the passage matrix (trace-time numpy "glue").
# ---------------------------------------------------------------------------
def map_RBS(n, k):
    """Maps each k-combination of n qubits to its basis index."""
    return {comb: idx for idx, comb in enumerate(combinations(range(n), k))}


def map_RBS_I2_2D(I):
    """Image basis: pixel (line, column) <-> qubit pair (line, I+column)."""
    mapping = {}
    for line in range(I):
        for column in range(I):
            mapping[(line, I + column)] = line * I + column
    return mapping


def passage_matrix_I_to_HW(I):
    """Numpy equivalent of Passage_matrix_I_to_HW (uint8 0/1 matrix)."""
    n_out = math.comb(2 * I, 2)
    P = np.zeros((n_out, I * I), dtype=np.uint8)
    mapping_input = map_RBS_I2_2D(I)
    mapping_output = map_RBS(2 * I, 2)
    for line in range(I):
        for column in range(I):
            P[mapping_output[(line, I + column)],
              mapping_input[(line, column + I)]] = 1
    return P


def _round_up(x, m):
    return ((x + m - 1) // m) * m


# ---------------------------------------------------------------------------
# Pallas kernel: out = x @ P^T on padded, lane/sublane-dense tiles.
# ---------------------------------------------------------------------------
def _basis_change_kernel(x_ref, pt_ref, o_ref):
    # x_ref : (TB, n_in_pad) f32, pt_ref : (n_in_pad, n_out_pad) f32,
    # o_ref : (TB, n_out_pad) f32.  0/1 weights in f32 -> exact result.
    o_ref[...] = jnp.dot(x_ref[...], pt_ref[...],
                         preferred_element_type=jnp.float32)


def basis_change_I_to_HW(input_state, passage_matrix, *, batch_tile=512):
    """out[b, o] = sum_i input_state[b, i] * passage_matrix[o, i].

    input_state    : (B, I**2) float
    passage_matrix : (binom(2I,2), I**2) 0/1 matrix (numpy or jax, any dtype)
    returns        : (B, binom(2I,2)) float32
    """
    B, n_in = input_state.shape
    P_np = np.asarray(passage_matrix)
    n_out, n_in2 = P_np.shape
    assert n_in == n_in2
    assert batch_tile % 8 == 0

    # Padded, TPU-friendly shapes:
    #   batch -> multiple of 8 (f32 sublanes) or of batch_tile when tiled,
    #   n_out -> multiple of 128 (lane-dense, unmasked stores),
    #   n_in  -> multiple of 8 (zero-padded reduction rows are inert).
    n_in_pad = _round_up(n_in, 8)
    n_out_pad = _round_up(n_out, 128)
    use_grid = B > batch_tile
    B_pad = _round_up(B, batch_tile if use_grid else 8)

    # Padded P^T built in numpy -> lowers to a single device constant.
    pt_np = np.zeros((n_in_pad, n_out_pad), dtype=np.float32)
    pt_np[:n_in, :n_out] = P_np.astype(np.float32).T
    pt = jnp.asarray(pt_np)

    x = input_state.astype(jnp.float32)
    if (B_pad, n_in_pad) != (B, n_in):
        x = jnp.pad(x, ((0, B_pad - B), (0, n_in_pad - n_in)))

    cost = pl.CostEstimate(
        flops=2 * B_pad * n_in_pad * n_out_pad,
        transcendentals=0,
        bytes_accessed=4 * (B_pad * n_in_pad
                            + n_in_pad * n_out_pad
                            + B_pad * n_out_pad),
    )

    if not use_grid:
        # Small batch: gridless call, whole (tiny) arrays live in VMEM as one
        # block each -- no per-step grid overhead, no scf.for wrapper.
        out_pad = pl.pallas_call(
            _basis_change_kernel,
            out_shape=jax.ShapeDtypeStruct((B_pad, n_out_pad), jnp.float32),
            cost_estimate=cost,
        )(x, pt)
    else:
        # Large batch: tile the batch axis ("parallel" -> megacore / v7x 2-TC
        # split); P^T index_map is constant so it is fetched once and stays
        # resident while batch tiles are double-buffered through VMEM.
        grid = (B_pad // batch_tile,)
        out_pad = pl.pallas_call(
            _basis_change_kernel,
            out_shape=jax.ShapeDtypeStruct((B_pad, n_out_pad), jnp.float32),
            grid=grid,
            in_specs=[
                pl.BlockSpec((batch_tile, n_in_pad), lambda b: (b, 0)),
                pl.BlockSpec((n_in_pad, n_out_pad), lambda b: (0, 0)),
            ],
            out_specs=pl.BlockSpec((batch_tile, n_out_pad), lambda b: (b, 0)),
            compiler_params=pltpu.CompilerParams(
                dimension_semantics=("parallel",)),
            cost_estimate=cost,
        )(x, pt)

    # Slice the lane/sublane padding back off.
    return out_pad[:B, :n_out]


# ---------------------------------------------------------------------------
# Reference (pure JAX) for correctness check.
# ---------------------------------------------------------------------------
def basis_change_ref(input_state, passage_matrix):
    return jnp.einsum('bi,oi->bo', input_state.astype(jnp.float32),
                      jnp.asarray(passage_matrix, jnp.float32))


if __name__ == "__main__":
    I = 4                        # image side; input dim I**2 = 16
    n_in = I * I
    n_out = math.comb(2 * I, 2)  # binom(2I, 2) = 28

    # Deterministic parameter (fixed combinatorial matrix, no checkpoint).
    P_np = passage_matrix_I_to_HW(I)        # (28, 16) uint8

    # Small batch -> gridless path (matches the module's (nbr_batch, I**2) input).
    batch = 2
    x_small = jax.random.normal(jax.random.PRNGKey(0), (batch, n_in),
                                dtype=jnp.float32)
    out_small = jax.block_until_ready(basis_change_I_to_HW(x_small, P_np))
    assert out_small.shape == (batch, n_out), out_small.shape
    np.testing.assert_allclose(np.asarray(out_small),
                               np.asarray(basis_change_ref(x_small, P_np)),
                               rtol=1e-5, atol=1e-5)

    # Larger batch -> batch-tiled "parallel" grid path.
    big_batch = 512
    x_big = jax.random.normal(jax.random.PRNGKey(1), (big_batch, n_in),
                              dtype=jnp.float32)
    out_big = jax.block_until_ready(
        basis_change_I_to_HW(x_big, P_np, batch_tile=128))
    assert out_big.shape == (big_batch, n_out), out_big.shape
    np.testing.assert_allclose(np.asarray(out_big),
                               np.asarray(basis_change_ref(x_big, P_np)),
                               rtol=1e-5, atol=1e-5)

    print("KERNEL_OK")
</pallas_src>

<mosaic_0001>
module attributes {stable_mosaic.version = 11 : i64} {
  func.func @_basis_change_kernel(%arg0: memref<8x16xf32, #tpu.memory_space<vmem>>, %arg1: memref<16x128xf32, #tpu.memory_space<vmem>>, %arg2: memref<8x128xf32, #tpu.memory_space<vmem>>) attributes {dimension_semantics = [], scalar_prefetch = 0 : i64, scratch_operands = 0 : i64, tpu.core_type = #tpu.core_type<tc>} {
    %c0 = arith.constant 0 : index
    %c0_0 = arith.constant 0 : index
    %0 = vector.load %arg0[%c0, %c0_0] : memref<8x16xf32, #tpu.memory_space<vmem>>, vector<8x16xf32>
    %c0_1 = arith.constant 0 : index
    %c0_2 = arith.constant 0 : index
    %1 = vector.load %arg1[%c0_1, %c0_2] : memref<16x128xf32, #tpu.memory_space<vmem>>, vector<16x128xf32>
    %cst = arith.constant dense<0.000000e+00> : vector<8x128xf32>
    %2 = tpu.matmul %0, %1, %cst {dimension_numbers = #tpu.dot_dimension_numbers<[1], [0], [0], [1], [0, 0, 1, 1], [], []>} : vector<8x16xf32>, vector<16x128xf32>, vector<8x128xf32> -> vector<8x128xf32>
    %c0_3 = arith.constant 0 : index
    %c0_4 = arith.constant 0 : index
    %3 = vector.load %arg2[%c0_3, %c0_4] : memref<8x128xf32, #tpu.memory_space<vmem>>, vector<8x128xf32>
    tpu.vector_store %arg2[%c0_3, %c0_4], %2 {strides = array<i32>} : memref<8x128xf32, #tpu.memory_space<vmem>>, vector<8x128xf32>,
    return
  }
}

</mosaic_0001>

<llo_original>
// kernel: tpu_custom_call.1
$region0: #{tpu_custom_call.1}
  #allocation0 [shape = 'u32[]', space=smem, size = 0x4, offset = 0x4, fixed_abs, tag = 'smem constant byte address 0x4 - core index']
  #allocation1 [shape = 'u32[144,128]{1,0:T(1,128)}', space=vmem, size = 0x12000, scoped, tag = 'internal scratch']
  %s0 = inlined_call_operand.hbm [shape: f32[8,16], index: 0, kind: input, shape index: {}]
  %s1 = inlined_call_operand.hbm [shape: f32[16,128], index: 1, kind: input, shape index: {}]
  %s2 = inlined_call_operand.hbm [shape: f32[8,128], index: 2, kind: output, shape index: {}]
  %s3 = sld [smem:[#allocation0]]
  $region26: #{tpu_custom_call.1} parent=0
    _
  %s5 = ssub.s32 1, %s3
  %s6 = scalar_select 0, %s5, %s3
  $region1: #{tpu_custom_call.1} parent=0
    #allocation2 [shape = 'u8[4096]{0}', space=vmem, size = 0x1000, scoped, tag = 'input window, operand 0, single buffered']
    #allocation3 [shape = 's32[1]{0}', space=sflag, size = 0x4, scoped, tag = 'scoped memory for tpu_custom_call.1']
    #allocation4 [shape = 's32[1]{0}', space=sflag, size = 0x4, scoped, tag = 'scoped memory for tpu_custom_call.1']
    #allocation5 [shape = 'u8[8192]{0}', space=vmem, size = 0x2000, scoped, tag = 'input window, operand 1, single buffered']
    #allocation6 [shape = 's32[1]{0}', space=sflag, size = 0x4, scoped, tag = 'scoped memory for tpu_custom_call.1']
    #allocation7 [shape = 'u8[4096]{0}', space=vmem, size = 0x1000, scoped, tag = 'output window, operand 0, single buffered']
    %7 = vsyncpa [#allocation3], 0
    %8 = vsyncpa [#allocation6], 0
    %9 = vsyncpa [#allocation4], 0
    // Predicated region
    $region2: #{tpu_custom_call.1} parent=1 // pred_check
      _
    $region3: #{tpu_custom_call.1} parent=1 // pred_check_branch
      %11 = sbr.rel (0) target = $region5
    $region4: #{tpu_custom_call.1} parent=1 // pred_region
      %s13 = ssub.s32 128, 128
      %14 = vsyncadd [#allocation3], %s13
      %s16 = sshll.u32 [#allocation2], 4
      %s17 = int_to_ptr.vmem [resolvable:$true] %s16
      %19 = dma.hbm_to_vmem [thread:$0]  %s0, 128, %s17, [#allocation3]
    $region5: #{tpu_custom_call.1} parent=1 // pred_fallthru
      _
    // Predicated region
    $region6: #{tpu_custom_call.1} parent=1 // pred_check
      _
    $region7: #{tpu_custom_call.1} parent=1 // pred_check_branch
      %21 = sbr.rel (0) target = $region9
    $region8: #{tpu_custom_call.1} parent=1 // pred_region
      %s23 = ssub.s32 256, 256
      %24 = vsyncadd [#allocation6], %s23
      %s25 = sshll.u32 [#allocation5], 4
      %s26 = int_to_ptr.vmem [resolvable:$true] %s25
      %31 = dma.hbm_to_vmem [thread:$0]  %s1, 256, %s26, [#allocation6], 128, 128, 8
    $region9: #{tpu_custom_call.1} parent=1 // pred_fallthru
      _
    // Predicated region
    $region10: #{tpu_custom_call.1} parent=1 // pred_check
      _
    $region11: #{tpu_custom_call.1} parent=1 // pred_check_branch
      %33 = sbr.rel (0) target = $region13
    $region12: #{tpu_custom_call.1} parent=1 // pred_region
      %34 = dma.done [#allocation3], 128
    $region13: #{tpu_custom_call.1} parent=1 // pred_fallthru
      _
    // Predicated region
    $region14: #{tpu_custom_call.1} parent=1 // pred_check
      _
    $region15: #{tpu_custom_call.1} parent=1 // pred_check_branch
      %36 = sbr.rel (0) target = $region17
    $region16: #{tpu_custom_call.1} parent=1 // pred_region
      %37 = dma.done [#allocation6], 256
    $region17: #{tpu_custom_call.1} parent=1 // pred_fallthru
      _
    %v38 = vld [vmem:[#allocation2] sm:$0xff]
    %v39 = vld [vmem:[#allocation5] sm:$0xff]
    %v40 = vld [vmem:[#allocation5 + $0x8] sm:$0xff]
    %vm41 = vcmask 130048
    %v43 = vsel %vm41, %v38, 0
    %45 = vmatprep.subr.mxu0 0.0
    %46 = vmatpush1.msra.mxu0 0.0
    %47 = vmatprep.subr.mxu0 0.0
    %48 = vmatpush1.msra.mxu0 0.0
    %49 = vmatprep.subr.mxu0 0.0
    %50 = vmatpush1.msra.mxu0 0.0
    %51 = vmatprep.subr.mxu0 0.0
    %52 = vmatpush1.msra.mxu0 0.0
    %53 = vmatprep.subr.mxu0 0.0
    %54 = vmatpush1.msra.mxu0 0.0
    %55 = vmatprep.subr.mxu0 0.0
    %56 = vmatpush1.msra.mxu0 0.0
    %57 = vmatprep.subr.mxu0 0.0
    %58 = vmatpush1.msra.mxu0 0.0
    %59 = vmatprep.subr.mxu0 0.0
    %60 = vmatpush1.msra.mxu0 0.0
    %61 = vmatprep.subr.mxu0 0.0
    %62 = vmatpush1.msra.mxu0 0.0
    %63 = vmatprep.subr.mxu0 0.0
    %64 = vmatpush1.msra.mxu0 0.0
    %65 = vmatprep.subr.mxu0 0.0
    %66 = vmatpush1.msra.mxu0 0.0
    %67 = vmatprep.subr.mxu0 0.0
    %68 = vmatpush1.msra.mxu0 0.0
    %69 = vmatprep.subr.mxu0 0.0
    %70 = vmatpush1.msra.mxu0 0.0
    %71 = vmatprep.subr.mxu0 0.0
    %72 = vmatpush1.msra.mxu0 0.0
    %73 = vmatprep.subr.mxu0 0.0
    %74 = vmatpush1.msra.mxu0 %v40
    %75 = vmatprep.subr.mxu0 0.0
    %76 = vmatpush1.msra.mxu0 %v39
    %77 = vmatprep.subr.mxu0 0.0
    %78 = vmatpush2.msra.mxu0 0.0
    %79 = vmatprep.subr.mxu0 0.0
    %80 = vmatpush2.msra.mxu0 0.0
    %81 = vmatprep.subr.mxu0 0.0
    %82 = vmatpush2.msra.mxu0 0.0
    %83 = vmatprep.subr.mxu0 0.0
    %84 = vmatpush2.msra.mxu0 0.0
    %85 = vmatprep.subr.mxu0 0.0
    %86 = vmatpush2.msra.mxu0 0.0
    %87 = vmatprep.subr.mxu0 0.0
    %88 = vmatpush2.msra.mxu0 0.0
    %89 = vmatprep.subr.mxu0 0.0
    %90 = vmatpush2.msra.mxu0 0.0
    %91 = vmatprep.subr.mxu0 0.0
    %92 = vmatpush2.msra.mxu0 0.0
    %93 = vmatprep.subr.mxu0 0.0
    %94 = vmatpush2.msra.mxu0 0.0
    %95 = vmatprep.subr.mxu0 0.0
    %96 = vmatpush2.msra.mxu0 0.0
    %97 = vmatprep.subr.mxu0 0.0
    %98 = vmatpush2.msra.mxu0 0.0
    %99 = vmatprep.subr.mxu0 0.0
    %100 = vmatpush2.msra.mxu0 0.0
    %101 = vmatprep.subr.mxu0 0.0
    %102 = vmatpush2.msra.mxu0 0.0
    %103 = vmatprep.subr.mxu0 0.0
    %104 = vmatpush2.msra.mxu0 0.0
    %105 = vmatprep.subr.mxu0 0.0
    %106 = vmatpush2.msra.mxu0 0.0
    %107 = vmatprep.subr.mxu0 0.0
    %108 = vmatpush2.msra.mxu0 0.0
    %109 = vmatprep.mubr.f32.mxu0 0.0
    %110 = vmatmul.mubr.f32.gmra.mxu0 %v43
    %v111 = vpop.f32.mrf.mxu0
    %v112 = vadd.f32 0.0, %v111
    %v113 = vpop.f32.mrf.mxu0
    %114 = vdwg.mxu0
    %115 = vst [vmem:[#allocation7] sm:$0xff] %v112
    // Predicated region
    $region18: #{tpu_custom_call.1} parent=1 // pred_check
      _
    $region19: #{tpu_custom_call.1} parent=1 // pred_check_branch
      %117 = sbr.rel (0) target = $region21
    $region20: #{tpu_custom_call.1} parent=1 // pred_region
      %s119 = ssub.s32 128, 128
      %120 = vsyncadd [#allocation4], %s119
      %s122 = sshll.u32 [#allocation7], 4
      %s123 = int_to_ptr.vmem [resolvable:$true] %s122
      %125 = dma.vmem_to_hbm [thread:$0]  %s123, 128, %s2, [#allocation4]
    $region21: #{tpu_custom_call.1} parent=1 // pred_fallthru
      _
    // Predicated region
    $region22: #{tpu_custom_call.1} parent=1 // pred_check
      _
    $region23: #{tpu_custom_call.1} parent=1 // pred_check_branch
      %127 = sbr.rel (0) target = $region25
    $region24: #{tpu_custom_call.1} parent=1 // pred_region
      %128 = dma.done [#allocation4], 128
    $region25: #{tpu_custom_call.1} parent=1 // pred_fallthru
      _
    %129 = vsyncpa [#allocation3], 1
    %130 = vsyncpa [#allocation6], 1
    %131 = vsyncpa [#allocation4], 1

</llo_original>
